<compile_context>
chip_gen: v7x
topology: tpu7x:2x2x1
jax: 0.10.0
libtpu: 0.0.40
codegen_flags: <defaults>
</compile_context>

<pallas_src>
import jax
import jax.numpy as jnp
from jax.experimental import pallas as pl
from jax.experimental.pallas import tpu as pltpu


def _tanh_kernel(x_ref, o_ref):
    # Elementwise tanh on the whole VMEM tile; the transcendental goes to the
    # EUP (its own VLIW slot), so the kernel stays HBM-bound.
    # TODO(synk): verify via pl.lower_as_mlir that jnp.tanh lowers to a single
    # EUP push per vreg (matters for bf16 on v7x's 3.2 TB/s roofline).
    o_ref[...] = jnp.tanh(x_ref[...])


def _pick_lane_width(n: int):
    """Widest multiple-of-128 lane width that divides n exactly, else None."""
    for w in (1024, 512, 256, 128):
        if n % w == 0:
            return w
    return None


def tanh_pallas(x: jax.Array, *, target_block_bytes: int = 4 * 1024 * 1024) -> jax.Array:
    """Elementwise tanh matching torch.tanh(x) semantics (shape/dtype preserved)."""
    orig_shape = x.shape
    orig_dtype = x.dtype

    n = x.size
    if n == 0:
        return x

    lane = _pick_lane_width(n)
    if lane is None:
        # Odd element count: pad->kernel->slice would be ~3 full HBM passes for
        # a purely bandwidth-bound op; XLA's fused elementwise tanh is 1 pass.
        # TODO(synk): a masked-store tail kernel would keep this path in Pallas.
        return jnp.tanh(x)

    rows = n // lane
    slab = x.reshape(rows, lane)

    itemsize = jnp.dtype(orig_dtype).itemsize
    # Sub-32-bit dtypes pack along sublanes (one bf16 vreg is [16,128]); keep
    # tile_rows a multiple of the packed sublane count to avoid masked stores.
    sublane_mult = max(8 * (4 // itemsize), 8)

    tile_rows = max(target_block_bytes // (lane * itemsize), sublane_mult)
    tile_rows = (tile_rows // sublane_mult) * sublane_mult
    if tile_rows >= rows:
        tile_rows = rows  # full-extent block is always legal

    grid = (pl.cdiv(rows, tile_rows),)  # partial last block handled by Pallas

    out = pl.pallas_call(
        _tanh_kernel,
        out_shape=jax.ShapeDtypeStruct((rows, lane), orig_dtype),
        grid_spec=pl.GridSpec(
            grid=grid,
            in_specs=[pl.BlockSpec((tile_rows, lane), lambda i: (i, 0))],
            out_specs=pl.BlockSpec((tile_rows, lane), lambda i: (i, 0)),
        ),
        compiler_params=pltpu.CompilerParams(
            # "parallel" vs "arbitrary" barely changes codegen; real 2-TC
            # sharding on v7x needs CORE_PARALLEL / pl.core_map.
            # TODO(synk): use pltpu.CORE_PARALLEL when specifically targeting v7x.
            dimension_semantics=("parallel",),
            # in+out double-buffered = 4x block bytes (16 MiB at the 4 MiB
            # default). Raise scoped VMEM explicitly so v5e's 16 MiB default
            # doesn't reject it; 32 MiB is within every generation's physical
            # VMEM (v7x: 64 MiB).
            vmem_limit_bytes=32 * 1024 * 1024,
        ),
        cost_estimate=pl.CostEstimate(
            flops=0, transcendentals=n, bytes_accessed=2 * n * itemsize
        ),
        # TODO(synk): input_output_aliases={0: 0} would halve peak HBM footprint
        # for large activations when the caller donates x.
    )(slab)

    return out.reshape(orig_shape)


if __name__ == "__main__":
    key = jax.random.PRNGKey(0)

    # Small NCHW input consistent with the layer: batch=2, channels=4, 16x16 spatial.
    x = jax.random.normal(key, (2, 4, 16, 16), dtype=jnp.float32)
    y = jax.block_until_ready(tanh_pallas(x))
    ref = jnp.tanh(x)
    assert y.shape == x.shape and y.dtype == x.dtype
    assert jnp.allclose(y, ref, atol=1e-5, rtol=1e-5)

    # bf16 passthrough path (looser tolerance for reduced precision).
    xb = x.astype(jnp.bfloat16)
    yb = jax.block_until_ready(tanh_pallas(xb))
    assert yb.dtype == jnp.bfloat16
    assert jnp.allclose(yb.astype(jnp.float32), jnp.tanh(xb).astype(jnp.float32),
                        atol=1e-2, rtol=1e-2)

    # Odd-sized input exercises the single-pass fallback (no pad/slice passes).
    xo = jax.random.normal(jax.random.PRNGKey(1), (3, 5, 7), dtype=jnp.float32)
    yo = jax.block_until_ready(tanh_pallas(xo))
    assert jnp.allclose(yo, jnp.tanh(xo), atol=1e-5, rtol=1e-5)

    print("KERNEL_OK")
</pallas_src>

<mosaic_0001>
module attributes {stable_mosaic.version = 11 : i64} {
  func.func @_tanh_kernel(%arg0: i32, %arg1: memref<2x1024xf32, #tpu.memory_space<vmem>>, %arg2: memref<2x1024xf32, #tpu.memory_space<vmem>>) attributes {dimension_semantics = [#tpu.dimension_semantics<parallel>], iteration_bounds = array<i64: 1>, scalar_prefetch = 0 : i64, scratch_operands = 0 : i64, tpu.core_type = #tpu.core_type<tc>, window_params = [{transform_indices = @transform_0, window_bounds = array<i64: 2, 1024>}, {transform_indices = @transform_1, window_bounds = array<i64: 2, 1024>}]} {
    %c0 = arith.constant 0 : index
    %c0_0 = arith.constant 0 : index
    %0 = vector.load %arg1[%c0, %c0_0] : memref<2x1024xf32, #tpu.memory_space<vmem>>, vector<2x1024xf32>
    %1 = math.tanh %0 : vector<2x1024xf32>
    %c0_1 = arith.constant 0 : index
    %c0_2 = arith.constant 0 : index
    %2 = vector.load %arg2[%c0_1, %c0_2] : memref<2x1024xf32, #tpu.memory_space<vmem>>, vector<2x1024xf32>
    tpu.vector_store %arg2[%c0_1, %c0_2], %1 {strides = array<i32>} : memref<2x1024xf32, #tpu.memory_space<vmem>>, vector<2x1024xf32>,
    return
  }
  func.func @transform_0(%arg0: i32) -> (i32, i32) {
    %c0_i32 = arith.constant 0 : i32
    %c0_i32_0 = arith.constant 0 : i32
    return %arg0, %c0_i32 : i32, i32
  }
  func.func @transform_1(%arg0: i32) -> (i32, i32) {
    %c0_i32 = arith.constant 0 : i32
    %c0_i32_0 = arith.constant 0 : i32
    return %arg0, %c0_i32 : i32, i32
  }
}

</mosaic_0001>

<llo_original>
// kernel: tpu_custom_call.1
$region0: #{tpu_custom_call.1}
  #allocation0 [shape = 'u32[]', space=smem, size = 0x4, offset = 0x4, fixed_abs, tag = 'smem constant byte address 0x4 - core index']
  #allocation1 [shape = 'u32[144,128]{1,0:T(1,128)}', space=vmem, size = 0x12000, scoped, tag = 'internal scratch']
  %s0 = inlined_call_operand.hbm [shape: f32[2,1024], index: 0, kind: input, shape index: {}]
  %s1 = inlined_call_operand.hbm [shape: f32[2,1024], index: 1, kind: output, shape index: {}]
  %s2 = sld [smem:[#allocation0]]
  $region18: #{tpu_custom_call.1} parent=0
    _
  %s4 = ssub.s32 1, %s2
  %s5 = scalar_select 0, %s4, %s2
  $region1: #{tpu_custom_call.1} parent=0
    #allocation2 [shape = 'u8[8192]{0}', space=vmem, size = 0x2000, scoped, tag = 'input window, operand 0, single buffered']
    #allocation3 [shape = 's32[1]{0}', space=sflag, size = 0x4, scoped, tag = 'scoped memory for tpu_custom_call.1']
    #allocation4 [shape = 's32[1]{0}', space=sflag, size = 0x4, scoped, tag = 'scoped memory for tpu_custom_call.1']
    #allocation5 [shape = 'u8[8192]{0}', space=vmem, size = 0x2000, scoped, tag = 'output window, operand 0, single buffered']
    %6 = vsyncpa [#allocation3], 0
    %7 = vsyncpa [#allocation4], 0
    // Predicated region
    $region2: #{tpu_custom_call.1} parent=1 // pred_check
      _
    $region3: #{tpu_custom_call.1} parent=1 // pred_check_branch
      %9 = sbr.rel (0) target = $region5
    $region4: #{tpu_custom_call.1} parent=1 // pred_region
      %s11 = ssub.s32 256, 256
      %12 = vsyncadd [#allocation3], %s11
      %s14 = sshll.u32 [#allocation2], 4
      %s15 = int_to_ptr.vmem [resolvable:$true] %s14
      %17 = dma.hbm_to_vmem [thread:$0]  %s0, 256, %s15, [#allocation3]
    $region5: #{tpu_custom_call.1} parent=1 // pred_fallthru
      _
    // Predicated region
    $region6: #{tpu_custom_call.1} parent=1 // pred_check
      _
    $region7: #{tpu_custom_call.1} parent=1 // pred_check_branch
      %19 = sbr.rel (0) target = $region9
    $region8: #{tpu_custom_call.1} parent=1 // pred_region
      %20 = dma.done [#allocation3], 256
    $region9: #{tpu_custom_call.1} parent=1 // pred_fallthru
      _
    %v21 = vld [vmem:[#allocation2] sm:$0xff]
    %v22 = vld [vmem:[#allocation2 + $0x8] sm:$0xff]
    %v23 = vtanh.pop %v21
    %v24 = vtanh.pop %v22
    %25 = vst [vmem:[#allocation5] sm:$0xff] %v23
    %26 = vst [vmem:[#allocation5 + $0x8] sm:$0xff] %v24
    // Predicated region
    $region10: #{tpu_custom_call.1} parent=1 // pred_check
      _
    $region11: #{tpu_custom_call.1} parent=1 // pred_check_branch
      %28 = sbr.rel (0) target = $region13
    $region12: #{tpu_custom_call.1} parent=1 // pred_region
      %s30 = ssub.s32 256, 256
      %31 = vsyncadd [#allocation4], %s30
      %s33 = sshll.u32 [#allocation5], 4
      %s34 = int_to_ptr.vmem [resolvable:$true] %s33
      %36 = dma.vmem_to_hbm [thread:$0]  %s34, 256, %s1, [#allocation4]
    $region13: #{tpu_custom_call.1} parent=1 // pred_fallthru
      _
    // Predicated region
    $region14: #{tpu_custom_call.1} parent=1 // pred_check
      _
    $region15: #{tpu_custom_call.1} parent=1 // pred_check_branch
      %38 = sbr.rel (0) target = $region17
    $region16: #{tpu_custom_call.1} parent=1 // pred_region
      %39 = dma.done [#allocation4], 256
    $region17: #{tpu_custom_call.1} parent=1 // pred_fallthru
      _
    %40 = vsyncpa [#allocation3], 1
    %41 = vsyncpa [#allocation4], 1

</llo_original>
